<compile_context>
chip_gen: v5e
topology: v5e:2x2
jax: 0.10.0
libtpu: 0.0.40
codegen_flags: <defaults>
</compile_context>

<pallas_src>
import jax
import jax.numpy as jnp
from jax import lax
from jax.experimental import pallas as pl
from jax.experimental.pallas import tpu as pltpu

HIDDEN_PAD = 64   # 60 padded up to a multiple of 8 sublanes
LANE = 128


def make_mlp_kernel(chunk):
    """Build the kernel for a given inner lane-chunk width (multiple of 128,
    or equal to the whole row tile)."""

    def mlp_kernel(x_ref, w1_ref, b1_ref, w2_ref, b2_ref, w3_ref, b3_ref, o_ref):
        # x_ref:  [1, tb]        feature-major batch tile
        # w1_ref: [64, 1]  b1_ref: [64, 1]
        # w2_ref: [64, 64] b2_ref: [64, 1]
        # w3_ref: [64, 1]  b3_ref: [1, 1]
        # o_ref:  [1, tb]        lane-dense output tile
        w1 = w1_ref[...]
        b1 = b1_ref[...]
        w2 = w2_ref[...]
        b2 = b2_ref[...]
        w3 = w3_ref[...]
        b3 = b3_ref[...]

        tb = x_ref.shape[1]
        n_chunks = tb // chunk

        # Biases/weights stay [64, 1] and broadcast per-chunk on the VPU:
        # at chunk=256 the in-flight [64, chunk] f32 temporaries already use
        # most of the 64-vreg file, so hoisting fully broadcast [64, chunk]
        # constants out of the loop would just force spills; the per-chunk
        # broadcast work hides under the EUP-bound (tanh) critical path.
        def body(c, carry):
            start = pl.multiple_of(c * chunk, chunk)
            x = x_ref[:, pl.ds(start, chunk)]                      # [1, chunk]

            # Layer 1: contraction length 1 -> VPU broadcast multiply-add.
            h1 = jnp.tanh(w1 * x + b1)                             # [64, chunk]

            # Layer 2: 64x64 matmul on the MXU (lanes = batch).
            h2 = jnp.tanh(
                jnp.dot(w2, h1, preferred_element_type=jnp.float32) + b2
            )                                                      # [64, chunk]

            # Layer 3: single output feature -> multiply + sublane (XLU)
            # reduce; the result and its store stay lane-dense.
            o_ref[:, pl.ds(start, chunk)] = (
                jnp.sum(w3 * h2, axis=0, keepdims=True) + b3
            )
            return carry

        lax.fori_loop(0, n_chunks, body, 0)

    return mlp_kernel


def init_params(key, layer_dims=(1, 60, 60, 1)):
    """torch.nn.Linear default init: U(-1/sqrt(fan_in), +1/sqrt(fan_in)).
    Weights in torch layout [out, in]; biases [out]."""
    params = {}
    keys = jax.random.split(key, 2 * (len(layer_dims) - 1))
    for li in range(len(layer_dims) - 1):
        fan_in, fan_out = layer_dims[li], layer_dims[li + 1]
        bound = 1.0 / (fan_in ** 0.5)
        params[f"W{li + 1}"] = jax.random.uniform(
            keys[2 * li], (fan_out, fan_in), jnp.float32,
            minval=-bound, maxval=bound)
        params[f"b{li + 1}"] = jax.random.uniform(
            keys[2 * li + 1], (fan_out,), jnp.float32,
            minval=-bound, maxval=bound)
    return params


def prepare_kernel_params(params, hpad=HIDDEN_PAD):
    """Pad hidden width to `hpad` and lay weights out feature-major."""
    W1, b1 = params["W1"], params["b1"]     # [60, 1], [60]
    W2, b2 = params["W2"], params["b2"]     # [60, 60], [60]
    W3, b3 = params["W3"], params["b3"]     # [1, 60], [1]
    h1 = W1.shape[0]
    h2 = W2.shape[0]
    w1p = jnp.zeros((hpad, 1), jnp.float32).at[:h1, :].set(W1)
    b1p = jnp.zeros((hpad, 1), jnp.float32).at[:h1, 0].set(b1)
    w2p = jnp.zeros((hpad, hpad), jnp.float32).at[:h2, :h1].set(W2)
    b2p = jnp.zeros((hpad, 1), jnp.float32).at[:h2, 0].set(b2)
    w3p = jnp.zeros((hpad, 1), jnp.float32).at[:h2, 0].set(W3[0])
    b3p = b3.reshape(1, 1).astype(jnp.float32)
    return w1p, b1p, w2p, b2p, w3p, b3p


def _choose_tile(N, tb_max, chunk):
    """Largest row tile <= tb_max that divides N, is a multiple of `chunk`,
    and leaves >= 2 grid steps (so both v7x TensorCores get work) when N
    permits; falls back to lane-aligned divisors, then to the whole array."""
    cap = min(tb_max, N // 2)
    candidates = [t for t in range(chunk, cap + 1, chunk) if N % t == 0]
    if candidates:
        return candidates[-1]
    lane_divs = [t for t in range(LANE, cap + 1, LANE) if N % t == 0]
    if lane_divs:
        return lane_divs[-1]
    return N


def wavefunction_mlp(x, params, *, tb_max=32768, chunk=256):
    """x: [N, 1] float32 (PyTorch convention).  Returns [N, 1]."""
    N, d_in = x.shape
    assert d_in == 1, "WaveFunctionMLP takes 1-D coordinates"
    assert chunk % LANE == 0

    tb = _choose_tile(N, tb_max, chunk)
    assert N % tb == 0
    assert tb == N or tb % LANE == 0, "row tile must be lane-aligned"
    if tb % chunk != 0:
        chunk = tb  # odd tile: single whole-tile chunk keeps the kernel valid

    w1, b1, w2, b2, w3, b3 = prepare_kernel_params(params)
    hpad = w2.shape[0]

    x_fm = x.reshape(1, N)  # feature-major (d_in == 1, so reshape == transpose)
    grid = (N // tb,)
    full = lambda i: (0, 0)  # weights/biases: constant block, resident across steps

    n_weight_bytes = 4 * (hpad * 1 + hpad + hpad * hpad + hpad + hpad + 1)
    cost = pl.CostEstimate(
        flops=(2 * hpad + 2 * hpad * hpad + 2 * hpad) * N,   # ~8448 flops/elem
        transcendentals=2 * hpad * N,                         # 128 tanh/elem
        bytes_accessed=8 * N + n_weight_bytes,
    )

    out_fm = pl.pallas_call(
        make_mlp_kernel(chunk),
        out_shape=jax.ShapeDtypeStruct((1, N), jnp.float32),
        grid_spec=pl.GridSpec(
            grid=grid,
            in_specs=[
                pl.BlockSpec((1, tb), lambda i: (0, i)),     # x tile
                pl.BlockSpec((hpad, 1), full),               # w1
                pl.BlockSpec((hpad, 1), full),               # b1
                pl.BlockSpec((hpad, hpad), full),            # w2
                pl.BlockSpec((hpad, 1), full),               # b2
                pl.BlockSpec((hpad, 1), full),               # w3
                pl.BlockSpec((1, 1), full),                  # b3
            ],
            out_specs=pl.BlockSpec((1, tb), lambda i: (0, i)),
        ),
        compiler_params=pltpu.CompilerParams(
            dimension_semantics=("parallel",),  # shard batch tiles across TCs (v7x)
        ),
        cost_estimate=cost,
    )(x_fm, w1, b1, w2, b2, w3, b3)

    return out_fm.reshape(N, 1)


def reference_mlp(x, params):
    h = jnp.tanh(x @ params["W1"].T + params["b1"])
    h = jnp.tanh(h @ params["W2"].T + params["b2"])
    return h @ params["W3"].T + params["b3"]


if __name__ == "__main__":
    key = jax.random.PRNGKey(0)
    pkey, xkey = jax.random.split(key)

    params = init_params(pkey, layer_dims=(1, 60, 60, 1))

    # Small batch of 1-D coordinates, shape [N, 1].  N=1024 with chunk=256
    # selects tb=512 -> grid=(2,) (both-TC path on v7x) with 2 inner chunks
    # per step, so both the multi-step grid and the chunk loop are exercised.
    N = 1024
    x = jax.random.uniform(xkey, (N, 1), jnp.float32, minval=-3.0, maxval=3.0)

    out = wavefunction_mlp(x, params)
    out = jax.block_until_ready(out)

    ref = reference_mlp(x, params)
    assert out.shape == (N, 1)
    assert jnp.allclose(out, ref, atol=1e-5, rtol=1e-5), "mismatch vs JAX reference"

    print("KERNEL_OK")
</pallas_src>

<mosaic_0001>
module attributes {stable_mosaic.version = 11 : i64} {
  func.func @mlp_kernel(%arg0: i32, %arg1: memref<1x512xf32, #tpu.memory_space<vmem>>, %arg2: memref<64x1xf32, #tpu.memory_space<vmem>>, %arg3: memref<64x1xf32, #tpu.memory_space<vmem>>, %arg4: memref<64x64xf32, #tpu.memory_space<vmem>>, %arg5: memref<64x1xf32, #tpu.memory_space<vmem>>, %arg6: memref<64x1xf32, #tpu.memory_space<vmem>>, %arg7: memref<1x1xf32, #tpu.memory_space<vmem>>, %arg8: memref<1x512xf32, #tpu.memory_space<vmem>>) attributes {dimension_semantics = [#tpu.dimension_semantics<parallel>], iteration_bounds = array<i64: 2>, scalar_prefetch = 0 : i64, scratch_operands = 0 : i64, tpu.core_type = #tpu.core_type<tc>, window_params = [{transform_indices = @transform_0, window_bounds = array<i64: 1, 512>}, {pipeline_mode = #tpu.pipeline_mode<synchronous>, transform_indices = @transform_1, window_bounds = array<i64: 64, 1>}, {pipeline_mode = #tpu.pipeline_mode<synchronous>, transform_indices = @transform_2, window_bounds = array<i64: 64, 1>}, {pipeline_mode = #tpu.pipeline_mode<synchronous>, transform_indices = @transform_3, window_bounds = array<i64: 64, 64>}, {pipeline_mode = #tpu.pipeline_mode<synchronous>, transform_indices = @transform_4, window_bounds = array<i64: 64, 1>}, {pipeline_mode = #tpu.pipeline_mode<synchronous>, transform_indices = @transform_5, window_bounds = array<i64: 64, 1>}, {pipeline_mode = #tpu.pipeline_mode<synchronous>, transform_indices = @transform_6, window_bounds = array<i64: 1, 1>}, {transform_indices = @transform_7, window_bounds = array<i64: 1, 512>}]} {
    %c0 = arith.constant 0 : index
    %c0_0 = arith.constant 0 : index
    %0 = vector.load %arg2[%c0, %c0_0] : memref<64x1xf32, #tpu.memory_space<vmem>>, vector<64x1xf32>
    %c0_1 = arith.constant 0 : index
    %c0_2 = arith.constant 0 : index
    %1 = vector.load %arg3[%c0_1, %c0_2] : memref<64x1xf32, #tpu.memory_space<vmem>>, vector<64x1xf32>
    %c0_3 = arith.constant 0 : index
    %c0_4 = arith.constant 0 : index
    %2 = vector.load %arg4[%c0_3, %c0_4] : memref<64x64xf32, #tpu.memory_space<vmem>>, vector<64x64xf32>
    %c0_5 = arith.constant 0 : index
    %c0_6 = arith.constant 0 : index
    %3 = vector.load %arg5[%c0_5, %c0_6] : memref<64x1xf32, #tpu.memory_space<vmem>>, vector<64x1xf32>
    %c0_7 = arith.constant 0 : index
    %c0_8 = arith.constant 0 : index
    %4 = vector.load %arg6[%c0_7, %c0_8] : memref<64x1xf32, #tpu.memory_space<vmem>>, vector<64x1xf32>
    %c0_9 = arith.constant 0 : index
    %c0_10 = arith.constant 0 : index
    %5 = vector.load %arg7[%c0_9, %c0_10] : memref<1x1xf32, #tpu.memory_space<vmem>>, vector<1x1xf32>
    %c0_i32 = arith.constant 0 : i32
    %c2_i32 = arith.constant 2 : i32
    %6 = arith.addi %c0_i32, %c2_i32 : i32
    %c1_i32 = arith.constant 1 : i32
    scf.for %arg9 = %c0_i32 to %6 step %c1_i32  : i32 {
      %c256_i32 = arith.constant 256 : i32
      %7 = arith.muli %arg9, %c256_i32 : i32
      %8 = tpu.assume_multiple %7, 256 : i32
      %c0_12 = arith.constant 0 : index
      %9 = arith.index_cast %8 : i32 to index
      %10 = vector.load %arg1[%c0_12, %9] : memref<1x512xf32, #tpu.memory_space<vmem>>, vector<1x256xf32>
      %11 = vector.broadcast %0 : vector<64x1xf32> to vector<64x256xf32>
      %12 = vector.broadcast %10 : vector<1x256xf32> to vector<64x256xf32>
      %13 = arith.mulf %11, %12 : vector<64x256xf32>
      %14 = vector.broadcast %1 : vector<64x1xf32> to vector<64x256xf32>
      %15 = arith.addf %13, %14 : vector<64x256xf32>
      %16 = math.tanh %15 : vector<64x256xf32>
      %cst = arith.constant dense<0.000000e+00> : vector<64x256xf32>
      %17 = tpu.matmul %2, %16, %cst {dimension_numbers = #tpu.dot_dimension_numbers<[1], [0], [0], [1], [0, 0, 1, 1], [], []>} : vector<64x64xf32>, vector<64x256xf32>, vector<64x256xf32> -> vector<64x256xf32>
      %18 = vector.broadcast %3 : vector<64x1xf32> to vector<64x256xf32>
      %19 = arith.addf %17, %18 : vector<64x256xf32>
      %20 = math.tanh %19 : vector<64x256xf32>
      %21 = vector.broadcast %4 : vector<64x1xf32> to vector<64x256xf32>
      %22 = arith.mulf %21, %20 : vector<64x256xf32>
      %cst_13 = arith.constant dense<0.000000e+00> : vector<256xf32>
      %23 = vector.multi_reduction <add>, %22, %cst_13 [0] : vector<64x256xf32> to vector<256xf32>
      %24 = vector.shape_cast %23 : vector<256xf32> to vector<1x256xf32>
      %25 = vector.broadcast %5 : vector<1x1xf32> to vector<1x256xf32>
      %26 = arith.addf %24, %25 : vector<1x256xf32>
      %c0_14 = arith.constant 0 : index
      %27 = arith.index_cast %8 : i32 to index
      %28 = vector.load %arg8[%c0_14, %27] : memref<1x512xf32, #tpu.memory_space<vmem>>, vector<1x256xf32>
      tpu.vector_store %arg8[%c0_14, %27], %26 {strides = array<i32>} : memref<1x512xf32, #tpu.memory_space<vmem>>, vector<1x256xf32>,
    }
    %c2_i32_11 = arith.constant 2 : i32
    return
  }
  func.func @transform_0(%arg0: i32) -> (i32, i32) {
    %c0_i32 = arith.constant 0 : i32
    %c0_i32_0 = arith.constant 0 : i32
    return %c0_i32, %arg0 : i32, i32
  }
  func.func @transform_1(%arg0: i32) -> (i32, i32) {
    %c0_i32 = arith.constant 0 : i32
    %c0_i32_0 = arith.constant 0 : i32
    %c0_i32_1 = arith.constant 0 : i32
    return %c0_i32, %c0_i32_0 : i32, i32
  }
  func.func @transform_2(%arg0: i32) -> (i32, i32) {
    %c0_i32 = arith.constant 0 : i32
    %c0_i32_0 = arith.constant 0 : i32
    %c0_i32_1 = arith.constant 0 : i32
    return %c0_i32, %c0_i32_0 : i32, i32
  }
  func.func @transform_3(%arg0: i32) -> (i32, i32) {
    %c0_i32 = arith.constant 0 : i32
    %c0_i32_0 = arith.constant 0 : i32
    %c0_i32_1 = arith.constant 0 : i32
    return %c0_i32, %c0_i32_0 : i32, i32
  }
  func.func @transform_4(%arg0: i32) -> (i32, i32) {
    %c0_i32 = arith.constant 0 : i32
    %c0_i32_0 = arith.constant 0 : i32
    %c0_i32_1 = arith.constant 0 : i32
    return %c0_i32, %c0_i32_0 : i32, i32
  }
  func.func @transform_5(%arg0: i32) -> (i32, i32) {
    %c0_i32 = arith.constant 0 : i32
    %c0_i32_0 = arith.constant 0 : i32
    %c0_i32_1 = arith.constant 0 : i32
    return %c0_i32, %c0_i32_0 : i32, i32
  }
  func.func @transform_6(%arg0: i32) -> (i32, i32) {
    %c0_i32 = arith.constant 0 : i32
    %c0_i32_0 = arith.constant 0 : i32
    %c0_i32_1 = arith.constant 0 : i32
    return %c0_i32, %c0_i32_0 : i32, i32
  }
  func.func @transform_7(%arg0: i32) -> (i32, i32) {
    %c0_i32 = arith.constant 0 : i32
    %c0_i32_0 = arith.constant 0 : i32
    return %c0_i32, %arg0 : i32, i32
  }
}

</mosaic_0001>

<llo_original>
// kernel: tpu_custom_call.1
$region0: #{tpu_custom_call.1}
  #allocation0 [shape = 'u32[]', space=smem, size = 0x4, offset = 0x4, fixed_abs, tag = 'smem constant byte address 0x4 - core index']
  #allocation1 [shape = 'u32[72,128]{1,0:T(1,128)}', space=vmem, size = 0x9000, scoped, tag = 'internal scratch']
  #allocation2 [shape = 'f32[1,1]{1,0:T(1,128)S(1)}', space=vmem, size = 0x200, scoped, tag = 'scoped memory for tpu_custom_call.1']
  %s0 = inlined_call_operand.vmem [shape: f32[1,1024], index: 0, kind: input, shape index: {}]
  %s1 = inlined_call_operand.vmem [shape: f32[64,1], index: 1, kind: input, shape index: {}]
  %s2 = inlined_call_operand.vmem [shape: f32[64,1], index: 2, kind: input, shape index: {}]
  %s3 = inlined_call_operand.vmem [shape: f32[64,64], index: 3, kind: input, shape index: {}]
  %s4 = inlined_call_operand.vmem [shape: f32[64,1], index: 4, kind: input, shape index: {}]
  %s5 = inlined_call_operand.vmem [shape: f32[64,1], index: 5, kind: input, shape index: {}]
  %s6 = inlined_call_operand.<no memory space> [shape: f32[1,1], index: 6, kind: input, shape index: {}]
  %s7 = inlined_call_operand.hbm [shape: f32[1,1024], index: 7, kind: output, shape index: {}]
  %s8 = sld [smem:[#allocation0]]
  $region68: #{tpu_custom_call.1} parent=0
    _
  %s10 = ssub.s32 1, %s8
  %s11 = scalar_select 0, %s10, %s8
  %v12 = vstv %s6
  %13 = vst [vmem:[#allocation2] sm:$0x1] %v12
  $region1: #{tpu_custom_call.1} parent=0
    #allocation3 [shape = 'u8[4096]{0}', space=vmem, size = 0x1000, scoped, tag = 'output window, operand 0']
    #allocation4 [shape = 's32[2]{0}', space=sflag, size = 0x8, scoped, tag = 'scoped memory for tpu_custom_call.1']
    %14 = vsyncpa [#allocation4], 0
    %s15 = scalar_lea.sflag [#allocation4], 1
    %16 = vsyncpa %s15, 0
    loop: start=0, step=1, limit=4
    $region2: #{tpu_custom_call.1} parent=1 // loop_pre_header
      _
    $region3: #{tpu_custom_call.1} parent=1 // loop_header
      %s18 = sphi 0, %s22
      %p19 = scmp.ge.s32.totalorder %s18, 4
      %s28 = sphi 0, %s30
      %s31 = sphi 0, %s28
      %s32 = sphi 0, %s31
      %s48 = sphi 0, %s32
      %s52 = sphi 0, %s52
      %s54 = sphi 0, %s52
      %s55 = sphi 0, %s54
      %s69 = sphi 0, %s55
      %s73 = sphi 0, %s73
      %s75 = sphi 0, %s73
      %s76 = sphi 0, %s75
      %s90 = sphi 0, %s76
      %s94 = sphi 0, %s94
      %s96 = sphi 0, %s94
      %s97 = sphi 0, %s96
      %s111 = sphi 0, %s97
      %s115 = sphi 0, %s115
      %s117 = sphi 0, %s115
      %s118 = sphi 0, %s117
      %s132 = sphi 0, %s118
      %s136 = sphi 0, %s136
      %s138 = sphi 0, %s136
      %s139 = sphi 0, %s138
      %s153 = sphi 0, %s139
      %s157 = sphi 0, %s157
      %s159 = sphi 0, %s157
      %s160 = sphi 0, %s159
      %s174 = sphi 0, %s160
      %s180 = sphi 0, %s182
      %s183 = sphi 0, %s180
      %s184 = sphi 0, %s183
      %s200 = sphi 0, %s184
    $region4: #{tpu_custom_call.1} parent=1 // loop_header_branch
      %21 = sbr.rel (%p19) target = $region8
    $region5: #{tpu_custom_call.1} parent=1 // loop_body
      %s23 = ssub.s32 %s18, 1
      %s24 = ssub.s32 %s18, 2
      %s25 = sadd.s32 %s18, 1
      %s26 = ssub.s32 %s18, %s25
      %p27 = scmp.eq.s32.totalorder %s26, 0
      %s29 = sadd.s32 %s28, 1
      %s30 = scalar_select %p27, %s28, %s29
      %p33 = pneg %p27
      %p34 = scmp.eq.s32.totalorder %s18, 1
      %p35 = por %p33, %p34
      %p36 = scmp.ne.s32.totalorder %s28, %s31
      %p37 = scmp.eq.s32.totalorder %s18, 0
      %p38 = por %p36, %p37
      %p39 = scmp.ne.s32.totalorder %s28, %s31
      %p40 = scmp.eq.s32.totalorder %s23, 1
      %p41 = por %p39, %p40
      %p42 = scmp.ne.s32.totalorder %s31, %s32
      %p43 = scmp.eq.s32.totalorder %s23, 0
      %p44 = por %p42, %p43
      %p45 = scmp.ne.s32.totalorder %s31, %s32
      %p46 = scmp.eq.s32.totalorder %s24, 1
      %p47 = por %p45, %p46
      %p49 = scmp.ne.s32.totalorder %s32, %s48
      %p50 = scmp.eq.s32.totalorder %s24, 0
      %p51 = por %p49, %p50
      %s53 = sadd.s32 %s52, 1
      %p56 = scmp.eq.s32.totalorder %s18, 1
      %p57 = scmp.ne.s32.totalorder %s52, %s54
      %p58 = scmp.eq.s32.totalorder %s18, 0
      %p59 = por %p57, %p58
      %p60 = scmp.ne.s32.totalorder %s52, %s54
      %p61 = scmp.eq.s32.totalorder %s23, 1
      %p62 = por %p60, %p61
      %p63 = scmp.ne.s32.totalorder %s54, %s55
      %p64 = scmp.eq.s32.totalorder %s23, 0
      %p65 = por %p63, %p64
      %p66 = scmp.ne.s32.totalorder %s54, %s55
      %p67 = scmp.eq.s32.totalorder %s24, 1
      %p68 = por %p66, %p67
      %p70 = scmp.ne.s32.totalorder %s55, %s69
      %p71 = scmp.eq.s32.totalorder %s24, 0
      %p72 = por %p70, %p71
      %s74 = sadd.s32 %s73, 1
      %p77 = scmp.eq.s32.totalorder %s18, 1
      %p78 = scmp.ne.s32.totalorder %s73, %s75
      %p79 = scmp.eq.s32.totalorder %s18, 0
      %p80 = por %p78, %p79
      %p81 = scmp.ne.s32.totalorder %s73, %s75
      %p82 = scmp.eq.s32.totalorder %s23, 1
      %p83 = por %p81, %p82
      %p84 = scmp.ne.s32.totalorder %s75, %s76
      %p85 = scmp.eq.s32.totalorder %s23, 0
      %p86 = por %p84, %p85
      %p87 = scmp.ne.s32.totalorder %s75, %s76
      %p88 = scmp.eq.s32.totalorder %s24, 1
      %p89 = por %p87, %p88
      %p91 = scmp.ne.s32.totalorder %s76, %s90
      %p92 = scmp.eq.s32.totalorder %s24, 0
      %p93 = por %p91, %p92
      %s95 = sadd.s32 %s94, 1
      %p98 = scmp.eq.s32.totalorder %s18, 1
      %p99 = scmp.ne.s32.totalorder %s94, %s96
      %p100 = scmp.eq.s32.totalorder %s18, 0
      %p101 = por %p99, %p100
      %p102 = scmp.ne.s32.totalorder %s94, %s96
      %p103 = scmp.eq.s32.totalorder %s23, 1
      %p104 = por %p102, %p103
      %p105 = scmp.ne.s32.totalorder %s96, %s97
      %p106 = scmp.eq.s32.totalorder %s23, 0
      %p107 = por %p105, %p106
      %p108 = scmp.ne.s32.totalorder %s96, %s97
      %p109 = scmp.eq.s32.totalorder %s24, 1
      %p110 = por %p108, %p109
      %p112 = scmp.ne.s32.totalorder %s97, %s111
      %p113 = scmp.eq.s32.totalorder %s24, 0
      %p114 = por %p112, %p113
      %s116 = sadd.s32 %s115, 1
      %p119 = scmp.eq.s32.totalorder %s18, 1
      %p120 = scmp.ne.s32.totalorder %s115, %s117
      %p121 = scmp.eq.s32.totalorder %s18, 0
      %p122 = por %p120, %p121
      %p123 = scmp.ne.s32.totalorder %s115, %s117
      %p124 = scmp.eq.s32.totalorder %s23, 1
      %p125 = por %p123, %p124
      %p126 = scmp.ne.s32.totalorder %s117, %s118
      %p127 = scmp.eq.s32.totalorder %s23, 0
      %p128 = por %p126, %p127
      %p129 = scmp.ne.s32.totalorder %s117, %s118
      %p130 = scmp.eq.s32.totalorder %s24, 1
      %p131 = por %p129, %p130
      %p133 = scmp.ne.s32.totalorder %s118, %s132
      %p134 = scmp.eq.s32.totalorder %s24, 0
      %p135 = por %p133, %p134
      %s137 = sadd.s32 %s136, 1
      %p140 = scmp.eq.s32.totalorder %s18, 1
      %p141 = scmp.ne.s32.totalorder %s136, %s138
      %p142 = scmp.eq.s32.totalorder %s18, 0
      %p143 = por %p141, %p142
      %p144 = scmp.ne.s32.totalorder %s136, %s138
      %p145 = scmp.eq.s32.totalorder %s23, 1
      %p146 = por %p144, %p145
      %p147 = scmp.ne.s32.totalorder %s138, %s139
      %p148 = scmp.eq.s32.totalorder %s23, 0
      %p149 = por %p147, %p148
      %p150 = scmp.ne.s32.totalorder %s138, %s139
      %p151 = scmp.eq.s32.totalorder %s24, 1
      %p152 = por %p150, %p151
      %p154 = scmp.ne.s32.totalorder %s139, %s153
      %p155 = scmp.eq.s32.totalorder %s24, 0
      %p156 = por %p154, %p155
      %s158 = sadd.s32 %s157, 1
      %p161 = scmp.eq.s32.totalorder %s18, 1
      %p162 = scmp.ne.s32.totalorder %s157, %s159
      %p163 = scmp.eq.s32.totalorder %s18, 0
      %p164 = por %p162, %p163
      %p165 = scmp.ne.s32.totalorder %s157, %s159
      %p166 = scmp.eq.s32.totalorder %s23, 1
      %p167 = por %p165, %p166
      %p168 = scmp.ne.s32.totalorder %s159, %s160
      %p169 = scmp.eq.s32.totalorder %s23, 0
      %p170 = por %p168, %p169
      %p171 = scmp.ne.s32.totalorder %s159, %s160
      %p172 = scmp.eq.s32.totalorder %s24, 1
      %p173 = por %p171, %p172
      %p175 = scmp.ne.s32.totalorder %s160, %s174
      %p176 = scmp.eq.s32.totalorder %s24, 0
      %p177 = por %p175, %p176
      %s178 = ssub.s32 %s18, %s25
      %p179 = scmp.eq.s32.totalorder %s178, 0
      %s181 = sadd.s32 %s180, 1
      %s182 = scalar_select %p179, %s180, %s181
      %p185 = pneg %p179
      %p186 = scmp.eq.s32.totalorder %s18, 1
      %p187 = por %p185, %p186
      %p188 = scmp.ne.s32.totalorder %s180, %s183
      %p189 = scmp.eq.s32.totalorder %s18, 0
      %p190 = por %p188, %p189
      %p191 = scmp.ne.s32.totalorder %s180, %s183
      %p192 = scmp.eq.s32.totalorder %s23, 1
      %p193 = por %p191, %p192
      %p194 = scmp.ne.s32.totalorder %s183, %s184
      %p195 = scmp.eq.s32.totalorder %s23, 0
      %p196 = por %p194, %p195
      %p197 = scmp.ne.s32.totalorder %s183, %s184
      %p198 = scmp.eq.s32.totalorder %s24, 1
      %p199 = por %p197, %p198
      %p201 = scmp.ne.s32.totalorder %s184, %s200
      %p202 = scmp.eq.s32.totalorder %s24, 0
      %p203 = por %p201, %p202
      %p204 = scmp.le.s32.totalorder 1, %s18
      %p205 = scmp.lt.s32.totalorder %s18, 3
      %p206 = pnand %p204, %p205
      %p207 = pneg %p206
      // Predicated region
      $region9: #{tpu_custom_call.1} parent=5 // pred_check
        _
      $region10: #{tpu_custom_call.1} parent=5 // pred_check_branch
        %209 = sbr.rel (%p206) target = $region12
      $region11: #{tpu_custom_call.1} parent=5 // pred_region
        %s210 = ssub.s32 %s18, 1
        // Predicated region
        $region13: #{tpu_custom_call.1} parent=11 // pred_check
          %p211 = pneg %p65
        $region14: #{tpu_custom_call.1} parent=11 // pred_check_branch
          %213 = sbr.rel (%p211) target = $region16
        $region15: #{tpu_custom_call.1} parent=11 // pred_region
          _
        $region16: #{tpu_custom_call.1} parent=11 // pred_fallthru
          _
        // Predicated region
        $region17: #{tpu_custom_call.1} parent=11 // pred_check
          %p214 = pneg %p86
        $region18: #{tpu_custom_call.1} parent=11 // pred_check_branch
          %216 = sbr.rel (%p214) target = $region20
        $region19: #{tpu_custom_call.1} parent=11 // pred_region
          _
        $region20: #{tpu_custom_call.1} parent=11 // pred_fallthru
          _
        // Predicated region
        $region21: #{tpu_custom_call.1} parent=11 // pred_check
          %p217 = pneg %p107
        $region22: #{tpu_custom_call.1} parent=11 // pred_check_branch
          %219 = sbr.rel (%p217) target = $region24
        $region23: #{tpu_custom_call.1} parent=11 // pred_region
          _
        $region24: #{tpu_custom_call.1} parent=11 // pred_fallthru
          _
        // Predicated region
        $region25: #{tpu_custom_call.1} parent=11 // pred_check
          %p220 = pneg %p128
        $region26: #{tpu_custom_call.1} parent=11 // pred_check_branch
          %222 = sbr.rel (%p220) target = $region28
        $region27: #{tpu_custom_call.1} parent=11 // pred_region
          _
        $region28: #{tpu_custom_call.1} parent=11 // pred_fallthru
          _
        // Predicated region
        $region29: #{tpu_custom_call.1} parent=11 // pred_check
          %p223 = pneg %p149
        $region30: #{tpu_custom_call.1} parent=11 // pred_check_branch
          %225 = sbr.rel (%p223) target = $region32
        $region31: #{tpu_custom_call.1} parent=11 // pred_region
          _
        $region32: #{tpu_custom_call.1} parent=11 // pred_fallthru
          _
        // Predicated region
        $region33: #{tpu_custom_call.1} parent=11 // pred_check
          %p226 = pneg %p170
        $region34: #{tpu_custom_call.1} parent=11 // pred_check_branch
          %228 = sbr.rel (%p226) target = $region36
        $region35: #{tpu_custom_call.1} parent=11 // pred_region
          _
        $region36: #{tpu_custom_call.1} parent=11 // pred_fallthru
          _
      $region12: #{tpu_custom_call.1} parent=5 // pred_fallthru
        _
      %p229 = scmp.lt.s32.totalorder %s18, 2
      // Predicated region
      $region37: #{tpu_custom_call.1} parent=5 // pred_check
        %p230 = pneg %p229
      $region38: #{tpu_custom_call.1} parent=5 // pred_check_branch
        %232 = sbr.rel (%p230) target = $region40
      $region39: #{tpu_custom_call.1} parent=5 // pred_region
        // Predicated region
        $region41: #{tpu_custom_call.1} parent=39 // pred_check
          %p233 = pneg %p38
        $region42: #{tpu_custom_call.1} parent=39 // pred_check_branch
          %235 = sbr.rel (%p233) target = $region44
        $region43: #{tpu_custom_call.1} parent=39 // pred_region
          %s236 = smul.u32 4, %s18
          %p237 = scmp.lt.s32.totalorder %s236, 7
          %s238 = scalar_select %p237, %s236, 7
          %s239 = scalar_lea.vmem %s0, %s238
          %s240 = smul.u32 4, %s18
        $region44: #{tpu_custom_call.1} parent=39 // pred_fallthru
          _
      $region40: #{tpu_custom_call.1} parent=5 // pred_fallthru
        _
      %p241 = scmp.le.s32.totalorder 1, %s18
      %p242 = scmp.lt.s32.totalorder %s18, 3
      %p243 = pnand %p241, %p242
      %p244 = pneg %p243
      // Predicated region
      $region45: #{tpu_custom_call.1} parent=5 // pred_check
        _
      $region46: #{tpu_custom_call.1} parent=5 // pred_check_branch
        %246 = sbr.rel (%p243) target = $region48
      $region47: #{tpu_custom_call.1} parent=5 // pred_region
        %s247 = ssub.s32 %s18, 1
        %s248 = smul.u32 4, %s23
        %p249 = scmp.lt.s32.totalorder %s248, 7
        %s250 = scalar_select %p249, %s248, 7
        %s251 = scalar_lea.vmem %s0, %s250
        %p252 = pneg %p44
        %p253 = pneg %p41
        %p254 = pneg %p65
        %p255 = pneg %p62
        %p256 = pneg %p86
        %p257 = pneg %p83
        %p258 = pneg %p107
        %p259 = pneg %p104
        %p260 = pneg %p128
        %p261 = pneg %p125
        %p262 = pneg %p149
        %p263 = pneg %p146
        %p264 = pneg %p170
        %p265 = pneg %p167
        %p266 = pneg %p196
        %p267 = pneg %p193
        %s268 = sand.u32 %s183, 1
        %s269 = scalar_lea.sflag [#allocation4], %s268
        %s270 = sand.u32 %s183, 1
        %s271 = smul.addr %s270, 4
        %s272 = scalar_lea.vmem [#allocation3], %s271
        %s273 = smul.u32 4, %s23
        %p274 = scmp.lt.s32.totalorder %s273, 7
        %s275 = scalar_select %p274, %s273, 7
        %s276 = scalar_lea.vmem %s0, %s275
        %s277 = smul.u32 4, %s23
        %s278 = smul.u32 4, %s23
        %v279 = vld [vmem:[%s1] sm:$0xff]
        %v280 = vld [vmem:[%s1 + $0x8] sm:$0xff]
        %v281 = vld [vmem:[%s1 + $0x10] sm:$0xff]
        %v282 = vld [vmem:[%s1 + $0x18] sm:$0xff]
        %v283 = vld [vmem:[%s1 + $0x20] sm:$0xff]
        %v284 = vld [vmem:[%s1 + $0x28] sm:$0xff]
        %v285 = vld [vmem:[%s1 + $0x30] sm:$0xff]
        %v286 = vld [vmem:[%s1 + $0x38] sm:$0xff]
        %v287 = vld [vmem:[%s2] sm:$0xff]
        %v288 = vld [vmem:[%s2 + $0x8] sm:$0xff]
        %v289 = vld [vmem:[%s2 + $0x10] sm:$0xff]
        %v290 = vld [vmem:[%s2 + $0x18] sm:$0xff]
        %v291 = vld [vmem:[%s2 + $0x20] sm:$0xff]
        %v292 = vld [vmem:[%s2 + $0x28] sm:$0xff]
        %v293 = vld [vmem:[%s2 + $0x30] sm:$0xff]
        %v294 = vld [vmem:[%s2 + $0x38] sm:$0xff]
        %v295 = vld [vmem:[%s3] sm:$0xff]
        %v296 = vld [vmem:[%s3 + $0x8] sm:$0xff]
        %v297 = vld [vmem:[%s3 + $0x10] sm:$0xff]
        %v298 = vld [vmem:[%s3 + $0x18] sm:$0xff]
        %v299 = vld [vmem:[%s3 + $0x20] sm:$0xff]
        %v300 = vld [vmem:[%s3 + $0x28] sm:$0xff]
        %v301 = vld [vmem:[%s3 + $0x30] sm:$0xff]
        %v302 = vld [vmem:[%s3 + $0x38] sm:$0xff]
        %v303 = vld [vmem:[%s4] sm:$0xff]
        %v304 = vld [vmem:[%s4 + $0x8] sm:$0xff]
        %v305 = vld [vmem:[%s4 + $0x10] sm:$0xff]
        %v306 = vld [vmem:[%s4 + $0x18] sm:$0xff]
        %v307 = vld [vmem:[%s4 + $0x20] sm:$0xff]
        %v308 = vld [vmem:[%s4 + $0x28] sm:$0xff]
        %v309 = vld [vmem:[%s4 + $0x30] sm:$0xff]
        %v310 = vld [vmem:[%s4 + $0x38] sm:$0xff]
        %v311 = vld [vmem:[%s5] sm:$0xff]
        %v312 = vld [vmem:[%s5 + $0x8] sm:$0xff]
        %v313 = vld [vmem:[%s5 + $0x10] sm:$0xff]
        %v314 = vld [vmem:[%s5 + $0x18] sm:$0xff]
        %v315 = vld [vmem:[%s5 + $0x20] sm:$0xff]
        %v316 = vld [vmem:[%s5 + $0x28] sm:$0xff]
        %v317 = vld [vmem:[%s5 + $0x30] sm:$0xff]
        %v318 = vld [vmem:[%s5 + $0x38] sm:$0xff]
        %v319 = vld [vmem:[#allocation2] sm:$0x1]
        loop: start=0, step=1, limit=2
        $region49: #{tpu_custom_call.1} parent=47 // loop_pre_header
          _
        $region50: #{tpu_custom_call.1} parent=47 // loop_header
          %s321 = sphi 0, %s325
          %p322 = scmp.ge.s32.totalorder %s321, 2
        $region51: #{tpu_custom_call.1} parent=47 // loop_header_branch
          %324 = sbr.rel (%p322) target = $region55
        $region52: #{tpu_custom_call.1} parent=47 // loop_body
          %s326 = smul.u32 %s321, 256
          %s327 = sshra.s32 %s326, 7
          %s328 = sand.u32 %s326, 127
          %s329 = scalar_lea.vmem %s276, %s327
          %v330 = vld [vmem:[%s329] sm:$0x3]
          %332 = vset.pattern.permute.xlu0 0
          %333 = vperm.xlu0 %332, %v279
          %v334 = vpop.permute.xlu0 %333
          %337 = vset.pattern.permute.xlu0 0
          %338 = vperm.xlu0 %337, %v280
          %v339 = vpop.permute.xlu0 %338
          %342 = vset.pattern.permute.xlu0 0
          %343 = vperm.xlu0 %342, %v281
          %v344 = vpop.permute.xlu0 %343
          %347 = vset.pattern.permute.xlu0 0
          %348 = vperm.xlu0 %347, %v282
          %v349 = vpop.permute.xlu0 %348
          %352 = vset.pattern.permute.xlu0 0
          %353 = vperm.xlu0 %352, %v283
          %v354 = vpop.permute.xlu0 %353
          %357 = vset.pattern.permute.xlu0 0
          %358 = vperm.xlu0 %357, %v284
          %v359 = vpop.permute.xlu0 %358
          %362 = vset.pattern.permute.xlu0 0
          %363 = vperm.xlu0 %362, %v285
          %v364 = vpop.permute.xlu0 %363
          %367 = vset.pattern.permute.xlu0 0
          %368 = vperm.xlu0 %367, %v286
          %v369 = vpop.permute.xlu0 %368
          %v372 = vperm.slane %v330, 0
          %v373 = vperm.slane %v330, 1
          %v376 = vmul.f32 %v334, %v372
          %v377 = vmul.f32 %v334, %v373
          %v378 = vmul.f32 %v339, %v372
          %v379 = vmul.f32 %v339, %v373
          %v380 = vmul.f32 %v344, %v372
          %v381 = vmul.f32 %v344, %v373
          %v382 = vmul.f32 %v349, %v372
          %v383 = vmul.f32 %v349, %v373
          %v384 = vmul.f32 %v354, %v372
          %v385 = vmul.f32 %v354, %v373
          %v386 = vmul.f32 %v359, %v372
          %v387 = vmul.f32 %v359, %v373
          %v388 = vmul.f32 %v364, %v372
          %v389 = vmul.f32 %v364, %v373
          %v390 = vmul.f32 %v369, %v372
          %v391 = vmul.f32 %v369, %v373
          %393 = vset.pattern.permute.xlu0 0
          %394 = vperm.xlu0 %393, %v287
          %v395 = vpop.permute.xlu0 %394
          %398 = vset.pattern.permute.xlu0 0
          %399 = vperm.xlu0 %398, %v288
          %v400 = vpop.permute.xlu0 %399
          %403 = vset.pattern.permute.xlu0 0
          %404 = vperm.xlu0 %403, %v289
          %v405 = vpop.permute.xlu0 %404
          %408 = vset.pattern.permute.xlu0 0
          %409 = vperm.xlu0 %408, %v290
          %v410 = vpop.permute.xlu0 %409
          %413 = vset.pattern.permute.xlu0 0
          %414 = vperm.xlu0 %413, %v291
          %v415 = vpop.permute.xlu0 %414
          %418 = vset.pattern.permute.xlu0 0
          %419 = vperm.xlu0 %418, %v292
          %v420 = vpop.permute.xlu0 %419
          %423 = vset.pattern.permute.xlu0 0
          %424 = vperm.xlu0 %423, %v293
          %v425 = vpop.permute.xlu0 %424
          %428 = vset.pattern.permute.xlu0 0
          %429 = vperm.xlu0 %428, %v294
          %v430 = vpop.permute.xlu0 %429
          %v432 = vadd.f32 %v376, %v395
          %v433 = vadd.f32 %v377, %v395
          %v434 = vadd.f32 %v378, %v400
          %v435 = vadd.f32 %v379, %v400
          %v436 = vadd.f32 %v380, %v405
          %v437 = vadd.f32 %v381, %v405
          %v438 = vadd.f32 %v382, %v410
          %v439 = vadd.f32 %v383, %v410
          %v440 = vadd.f32 %v384, %v415
          %v441 = vadd.f32 %v385, %v415
          %v442 = vadd.f32 %v386, %v420
          %v443 = vadd.f32 %v387, %v420
          %v444 = vadd.f32 %v388, %v425
          %v445 = vadd.f32 %v389, %v425
          %v446 = vadd.f32 %v390, %v430
          %v447 = vadd.f32 %v391, %v430
          %v448 = vtanh.pop %v432
          %v449 = vtanh.pop %v433
          %v450 = vtanh.pop %v434
          %v451 = vtanh.pop %v435
          %v452 = vtanh.pop %v436
          %v453 = vtanh.pop %v437
          %v454 = vtanh.pop %v438
          %v455 = vtanh.pop %v439
          %v456 = vtanh.pop %v440
          %v457 = vtanh.pop %v441
          %v458 = vtanh.pop %v442
          %v459 = vtanh.pop %v443
          %v460 = vtanh.pop %v444
          %v461 = vtanh.pop %v445
          %v462 = vtanh.pop %v446
          %v463 = vtanh.pop %v447
          %465 = vset.pattern.permute.xlu0 0
          %466 = vperm.xlu0 %465, %v303
          %v467 = vpop.permute.xlu0 %466
          %470 = vset.pattern.permute.xlu0 0
          %471 = vperm.xlu0 %470, %v304
          %v472 = vpop.permute.xlu0 %471
          %475 = vset.pattern.permute.xlu0 0
          %476 = vperm.xlu0 %475, %v305
          %v477 = vpop.permute.xlu0 %476
          %480 = vset.pattern.permute.xlu0 0
          %481 = vperm.xlu0 %480, %v306
          %v482 = vpop.permute.xlu0 %481
          %485 = vset.pattern.permute.xlu0 0
          %486 = vperm.xlu0 %485, %v307
          %v487 = vpop.permute.xlu0 %486
          %490 = vset.pattern.permute.xlu0 0
          %491 = vperm.xlu0 %490, %v308
          %v492 = vpop.permute.xlu0 %491
          %495 = vset.pattern.permute.xlu0 0
          %496 = vperm.xlu0 %495, %v309
          %v497 = vpop.permute.xlu0 %496
          %500 = vset.pattern.permute.xlu0 0
          %501 = vperm.xlu0 %500, %v310
          %v502 = vpop.permute.xlu0 %501
          %vm504 = vcmask 523264
          %v506 = vsel %vm504, %v295, 0
          %v509 = vsel %vm504, %v296, 0
          %v512 = vsel %vm504, %v297, 0
          %v515 = vsel %vm504, %v298, 0
          %v518 = vsel %vm504, %v299, 0
          %v521 = vsel %vm504, %v300, 0
          %v524 = vsel %vm504, %v301, 0
          %v527 = vsel %vm504, %v302, 0
          %529 = vmatpush.msra.mxu0 0.0
          %530 = vmatpush.msra.mxu0 0.0
          %531 = vmatpush.msra.mxu0 0.0
          %532 = vmatpush.msra.mxu0 0.0
          %533 = vmatpush.msra.mxu0 0.0
          %534 = vmatpush.msra.mxu0 0.0
          %535 = vmatpush.msra.mxu0 0.0
          %536 = vmatpush.msra.mxu0 0.0
          %537 = vmatpush.msra.mxu0 %v462
          %538 = vmatpush.msra.mxu0 %v460
          %539 = vmatpush.msra.mxu0 %v458
          %540 = vmatpush.msra.mxu0 %v456
          %541 = vmatpush.msra.mxu0 %v454
          %542 = vmatpush.msra.mxu0 %v452
          %543 = vmatpush.msra.mxu0 %v450
          %544 = vmatpush.msra.mxu0 %v448
          %545 = vmatmul.f32.gmra.mxu0 %v506
          %v546 = vpop.f32.mrf.mxu0
          %v547 = vadd.f32 %v467, %v546
          %548 = vmatmul.f32.gmra.mxu0 %v509
          %v549 = vpop.f32.mrf.mxu0
          %v550 = vadd.f32 %v472, %v549
          %551 = vmatmul.f32.gmra.mxu0 %v512
          %v552 = vpop.f32.mrf.mxu0
          %v553 = vadd.f32 %v477, %v552
          %554 = vmatmul.f32.gmra.mxu0 %v515
          %v555 = vpop.f32.mrf.mxu0
          %v556 = vadd.f32 %v482, %v555
          %557 = vmatmul.f32.gmra.mxu0 %v518
          %v558 = vpop.f32.mrf.mxu0
          %v559 = vadd.f32 %v487, %v558
          %560 = vmatmul.f32.gmra.mxu0 %v521
          %v561 = vpop.f32.mrf.mxu0
          %v562 = vadd.f32 %v492, %v561
          %563 = vmatmul.f32.gmra.mxu0 %v524
          %v564 = vpop.f32.mrf.mxu0
          %v565 = vadd.f32 %v497, %v564
          %566 = vmatmul.f32.gmra.mxu0 %v527
          %v567 = vpop.f32.mrf.mxu0
          %v568 = vadd.f32 %v502, %v567
          %569 = vdwg.mxu0
          %570 = vmatpush.msra.mxu0 0.0
          %571 = vmatpush.msra.mxu0 0.0
          %572 = vmatpush.msra.mxu0 0.0
          %573 = vmatpush.msra.mxu0 0.0
          %574 = vmatpush.msra.mxu0 0.0
          %575 = vmatpush.msra.mxu0 0.0
          %576 = vmatpush.msra.mxu0 0.0
          %577 = vmatpush.msra.mxu0 0.0
          %578 = vmatpush.msra.mxu0 %v463
          %579 = vmatpush.msra.mxu0 %v461
          %580 = vmatpush.msra.mxu0 %v459
          %581 = vmatpush.msra.mxu0 %v457
          %582 = vmatpush.msra.mxu0 %v455
          %583 = vmatpush.msra.mxu0 %v453
          %584 = vmatpush.msra.mxu0 %v451
          %585 = vmatpush.msra.mxu0 %v449
          %586 = vmatmul.f32.gmra.mxu0 %v506
          %v587 = vpop.f32.mrf.mxu0
          %v588 = vadd.f32 %v467, %v587
          %589 = vmatmul.f32.gmra.mxu0 %v509
          %v590 = vpop.f32.mrf.mxu0
          %v591 = vadd.f32 %v472, %v590
          %592 = vmatmul.f32.gmra.mxu0 %v512
          %v593 = vpop.f32.mrf.mxu0
          %v594 = vadd.f32 %v477, %v593
          %595 = vmatmul.f32.gmra.mxu0 %v515
          %v596 = vpop.f32.mrf.mxu0
          %v597 = vadd.f32 %v482, %v596
          %598 = vmatmul.f32.gmra.mxu0 %v518
          %v599 = vpop.f32.mrf.mxu0
          %v600 = vadd.f32 %v487, %v599
          %601 = vmatmul.f32.gmra.mxu0 %v521
          %v602 = vpop.f32.mrf.mxu0
          %v603 = vadd.f32 %v492, %v602
          %604 = vmatmul.f32.gmra.mxu0 %v524
          %v605 = vpop.f32.mrf.mxu0
          %v606 = vadd.f32 %v497, %v605
          %607 = vmatmul.f32.gmra.mxu0 %v527
          %v608 = vpop.f32.mrf.mxu0
          %v609 = vadd.f32 %v502, %v608
          %610 = vdwg.mxu0
          %v611 = vtanh.pop %v547
          %v612 = vtanh.pop %v588
          %v613 = vtanh.pop %v550
          %v614 = vtanh.pop %v591
          %v615 = vtanh.pop %v553
          %v616 = vtanh.pop %v594
          %v617 = vtanh.pop %v556
          %v618 = vtanh.pop %v597
          %v619 = vtanh.pop %v559
          %v620 = vtanh.pop %v600
          %v621 = vtanh.pop %v562
          %v622 = vtanh.pop %v603
          %v623 = vtanh.pop %v565
          %v624 = vtanh.pop %v606
          %v625 = vtanh.pop %v568
          %v626 = vtanh.pop %v609
          %628 = vset.pattern.permute.xlu0 0
          %629 = vperm.xlu0 %628, %v311
          %v630 = vpop.permute.xlu0 %629
          %633 = vset.pattern.permute.xlu0 0
          %634 = vperm.xlu0 %633, %v312
          %v635 = vpop.permute.xlu0 %634
          %638 = vset.pattern.permute.xlu0 0
          %639 = vperm.xlu0 %638, %v313
          %v640 = vpop.permute.xlu0 %639
          %643 = vset.pattern.permute.xlu0 0
          %644 = vperm.xlu0 %643, %v314
          %v645 = vpop.permute.xlu0 %644
          %648 = vset.pattern.permute.xlu0 0
          %649 = vperm.xlu0 %648, %v315
          %v650 = vpop.permute.xlu0 %649
          %653 = vset.pattern.permute.xlu0 0
          %654 = vperm.xlu0 %653, %v316
          %v655 = vpop.permute.xlu0 %654
          %658 = vset.pattern.permute.xlu0 0
          %659 = vperm.xlu0 %658, %v317
          %v660 = vpop.permute.xlu0 %659
          %663 = vset.pattern.permute.xlu0 0
          %664 = vperm.xlu0 %663, %v318
          %v665 = vpop.permute.xlu0 %664
          %v667 = vmul.f32 %v630, %v611
          %v668 = vmul.f32 %v630, %v612
          %v669 = vmul.f32 %v635, %v613
          %v670 = vmul.f32 %v635, %v614
          %v671 = vmul.f32 %v640, %v615
          %v672 = vmul.f32 %v640, %v616
          %v673 = vmul.f32 %v645, %v617
          %v674 = vmul.f32 %v645, %v618
          %v675 = vmul.f32 %v650, %v619
          %v676 = vmul.f32 %v650, %v620
          %v677 = vmul.f32 %v655, %v621
          %v678 = vmul.f32 %v655, %v622
          %v679 = vmul.f32 %v660, %v623
          %v680 = vmul.f32 %v660, %v624
          %v681 = vmul.f32 %v665, %v625
          %v682 = vmul.f32 %v665, %v626
          %v683 = vadd.f32 %v667, %v669
          %v684 = vadd.f32 %v683, %v671
          %v685 = vadd.f32 %v684, %v673
          %v686 = vadd.f32 %v685, %v675
          %v687 = vadd.f32 %v686, %v677
          %v688 = vadd.f32 %v687, %v679
          %v689 = vadd.f32 %v688, %v681
          %v690 = vrot.slane %v689, 4
          %v691 = vadd.f32 %v689, %v690
          %v692 = vrot.slane %v691, 2
          %v693 = vadd.f32 %v691, %v692
          %v694 = vrot.slane %v693, 1
          %v695 = vadd.f32 %v693, %v694
          %v696 = vadd.f32 %v668, %v670
          %v697 = vadd.f32 %v696, %v672
          %v698 = vadd.f32 %v697, %v674
          %v699 = vadd.f32 %v698, %v676
          %v700 = vadd.f32 %v699, %v678
          %v701 = vadd.f32 %v700, %v680
          %v702 = vadd.f32 %v701, %v682
          %v703 = vrot.slane %v702, 4
          %v704 = vadd.f32 %v702, %v703
          %v705 = vrot.slane %v704, 2
          %v706 = vadd.f32 %v704, %v705
          %v707 = vrot.slane %v706, 1
          %v708 = vadd.f32 %v706, %v707
          %710 = vset.pattern.permute.xlu0 0
          %711 = vperm.xlu0 %710, %v319
          %v712 = vpop.permute.xlu0 %711
          %v714 = vperm.slane %v712, 0
          %v715 = vadd.f32 %v695, %v714
          %v716 = vadd.f32 %v708, %v714
          %v719 = vrot.slane %v716, 7
          %vm720 = vcmask 1040384
          %v721 = vsel %vm720, %v715, %v719
          %s723 = scalar_lea.vmem %s272, %s327 [#allocation3]
          %v724 = vlaneseq
          %vm725 = vcmp.ge.s32.totalorder %v724, 0
          %vm726 = vcmp.lt.s32.totalorder %v724, 256
          %vm727 = vmand %vm725, %vm726
          %728 = vst.msk [vmem:[%s723] sm:$0x3] %vm727, %v721
        $region53: #{tpu_custom_call.1} parent=47 // loop_footer
          %s325 = sadd.s32 1, %s321
        $region54: #{tpu_custom_call.1} parent=47 // loop_footer_branch
          %320 = sbr.rel target = $region50
        $region55: #{tpu_custom_call.1} parent=47 // loop_exit
          _
        %s729 = sand.u32 %s183, 1
        %s730 = scalar_lea.sflag [#allocation4], %s729
        %s731 = sand.u32 %s183, 1
        %s732 = smul.addr %s731, 4
        %s733 = scalar_lea.vmem [#allocation3], %s732
        // Predicated region
        $region56: #{tpu_custom_call.1} parent=47 // pred_check
          %p734 = pneg %p193
        $region57: #{tpu_custom_call.1} parent=47 // pred_check_branch
          %736 = sbr.rel (%p734) target = $region59
        $region58: #{tpu_custom_call.1} parent=47 // pred_region
          %s737 = smul.u32 4, %s23
          %739 = vsyncadd %s730, 0
          %s740 = scalar_lea.hbm %s7, %s737
          %s742 = sshll.u32 %s733, 4
          %s743 = int_to_ptr.vmem [resolvable:$true] %s742
          %s744 = sshll.u32 %s740, 4
          %s745 = int_to_ptr.hbm [resolvable:$true] %s744
          %747 = dma.vmem_to_hbm [thread:$0]  %s743, 64, %s745, %s730
        $region59: #{tpu_custom_call.1} parent=47 // pred_fallthru
          _
      $region48: #{tpu_custom_call.1} parent=5 // pred_fallthru
        _
      %p748 = scmp.le.s32.totalorder 2, %s18
      // Predicated region
      $region60: #{tpu_custom_call.1} parent=5 // pred_check
        %p749 = pneg %p748
      $region61: #{tpu_custom_call.1} parent=5 // pred_check_branch
        %751 = sbr.rel (%p749) target = $region63
      $region62: #{tpu_custom_call.1} parent=5 // pred_region
        %s752 = ssub.s32 %s18, 2
        // Predicated region
        $region64: #{tpu_custom_call.1} parent=62 // pred_check
          %p753 = pneg %p199
        $region65: #{tpu_custom_call.1} parent=62 // pred_check_branch
          %755 = sbr.rel (%p753) target = $region67
        $region66: #{tpu_custom_call.1} parent=62 // pred_region
          %s756 = sand.u32 %s184, 1
          %s757 = scalar_lea.sflag [#allocation4], %s756
          %s758 = sand.u32 %s184, 1
          %s759 = smul.addr %s758, 4
          %s760 = scalar_lea.vmem [#allocation3], %s759
          %762 = dma.done %s757, 64
        $region67: #{tpu_custom_call.1} parent=62 // pred_fallthru
          _
      $region63: #{tpu_custom_call.1} parent=5 // pred_fallthru
        _
    $region6: #{tpu_custom_call.1} parent=1 // loop_footer
      %s22 = sadd.s32 1, %s18
    $region7: #{tpu_custom_call.1} parent=1 // loop_footer_branch
      %17 = sbr.rel target = $region3
    $region8: #{tpu_custom_call.1} parent=1 // loop_exit
      _
    %763 = vsyncpa [#allocation4], 1
    %s764 = scalar_lea.sflag [#allocation4], 1
    %765 = vsyncpa %s764, 1

</llo_original>
